<compile_context>
chip_gen: v6e
topology: v6e:2x2x1
jax: 0.10.0
libtpu: 0.0.40
codegen_flags: <defaults>
</compile_context>

<pallas_src>
import functools

import jax
import jax.numpy as jnp
from jax.experimental import pallas as pl
from jax.experimental.pallas import tpu as pltpu


# ----------------------------------------------------------------------------
# Pallas kernels
# ----------------------------------------------------------------------------

def _conv_gemm_kernel(p_ref, w_ref, b_ref, o_ref, *, apply_relu: bool):
    """One (tm, K) @ (K, tn) bf16 GEMM tile + bias + optional ReLU (f32 epilogue).

    p_ref: (tm, K)  bf16 im2col patches tile (K = 9*Cin)
    w_ref: (K, tn)  bf16 weights tile
    b_ref: (1, tn)  f32 bias tile
    o_ref: (tm, tn) f32 output tile
    """
    acc = jnp.dot(p_ref[...], w_ref[...], preferred_element_type=jnp.float32)
    acc = acc + b_ref[...]
    if apply_relu:
        acc = jnp.maximum(acc, 0.0)
    o_ref[...] = acc.astype(o_ref.dtype)


def _maxpool2x2_kernel(x_ref, o_ref):
    """2x2 / stride-2 max pool, channels kept lane-dense.

    x_ref: (tb, 2, W2, 2, C)   row-major regrouping of NHWC input
    o_ref: (tb, W2, C)
    """
    x = x_ref[...]
    m = jnp.maximum(x[:, 0], x[:, 1])                     # pool over row pair
    o_ref[...] = jnp.maximum(m[:, :, 0, :], m[:, :, 1, :])  # pool over col pair


# ----------------------------------------------------------------------------
# Wrappers (glue: padding / im2col / reshapes stay in plain JAX)
# ----------------------------------------------------------------------------

def _pick_tm(M, K):
    """Pick the M tile: big to amortize grid overhead, capped so the bf16
    patch tile stays under ~4 MiB (v7x 64 MiB VMEM with double buffering)."""
    if M <= 256:
        return M
    cap_elems = (4 * 1024 * 1024) // (2 * K)
    tm = min(1024, M, max(256, cap_elems))
    return max(256, (tm // 256) * 256)


def conv3x3_same(x_nhwc, w, b, apply_relu):
    """x_nhwc: (N,H,W,Cin) f32; w: (9*Cin, Cout) bf16; b: (1, Cout) f32
    -> (N,H,W,Cout) f32."""
    N, H, W, Cin = x_nhwc.shape
    K, Cout = w.shape
    M = N * H * W

    # im2col: 9 shifted views folded into the contraction dim, stored bf16.
    x_pad = jnp.pad(x_nhwc, ((0, 0), (1, 1), (1, 1), (0, 0)))
    taps = [x_pad[:, kh:kh + H, kw:kw + W, :]
            for kh in range(3) for kw in range(3)]
    patches = jnp.stack(taps, axis=3).reshape(M, K).astype(jnp.bfloat16)

    tm = _pick_tm(M, K)
    tn = Cout if Cout <= 256 else 256
    grid = (pl.cdiv(M, tm), pl.cdiv(Cout, tn))   # Cout axis innermost: patch
                                                 # tile reused, small weights stream

    kern = functools.partial(_conv_gemm_kernel, apply_relu=apply_relu)
    out = pl.pallas_call(
        kern,
        out_shape=jax.ShapeDtypeStruct((M, Cout), jnp.float32),
        grid=grid,
        in_specs=[
            pl.BlockSpec((tm, K), lambda i, j: (i, 0)),
            pl.BlockSpec((K, tn), lambda i, j: (0, j)),
            pl.BlockSpec((1, tn), lambda i, j: (0, j)),
        ],
        out_specs=pl.BlockSpec((tm, tn), lambda i, j: (i, j)),
        compiler_params=pltpu.CompilerParams(
            dimension_semantics=("parallel", "parallel"),
            vmem_limit_bytes=32 * 1024 * 1024),
    )(patches, w, b)
    return out.reshape(N, H, W, Cout)


def maxpool2x2(x_nhwc):
    """x_nhwc: (N,H,W,C) -> (N,H//2,W//2,C), 2x2 window, stride 2."""
    N, H, W, C = x_nhwc.shape
    H2, W2 = H // 2, W // 2
    R = N * H2
    xr = x_nhwc.reshape(R, 2, W2, 2, C)           # pure row-major regrouping

    row_bytes = 2 * W2 * 2 * C * 4
    tb = max(1, min(R, (2 * 1024 * 1024) // row_bytes))
    grid = (pl.cdiv(R, tb),)

    out = pl.pallas_call(
        _maxpool2x2_kernel,
        out_shape=jax.ShapeDtypeStruct((R, W2, C), x_nhwc.dtype),
        grid=grid,
        in_specs=[pl.BlockSpec((tb, 2, W2, 2, C), lambda i: (i, 0, 0, 0, 0))],
        out_specs=pl.BlockSpec((tb, W2, C), lambda i: (i, 0, 0)),
        compiler_params=pltpu.CompilerParams(
            dimension_semantics=("parallel",)),
    )(xr)
    return out.reshape(N, H2, W2, C)


# ----------------------------------------------------------------------------
# VGG19 feature-extractor definition (features[:8] or features[:35])
# ----------------------------------------------------------------------------

_VGG19_CFG = [64, 64, 'M', 128, 128, 'M', 256, 256, 256, 256, 'M',
              512, 512, 512, 512, 'M', 512, 512, 512, 512, 'M']


def build_vgg19_layers(conv_index=54):
    if conv_index == 22:
        limit = 8           # torchvision vgg19.features[:8]
    elif conv_index == 54:
        limit = 35          # torchvision vgg19.features[:35]
    else:
        raise ValueError("conv_index must be 22 or 54")
    layers = []
    idx = 0
    cin = 3
    for v in _VGG19_CFG:
        if idx >= limit:
            break
        if v == 'M':
            layers.append(('pool',))
            idx += 1
        else:
            relu = (idx + 1) < limit
            layers.append(('conv', cin, v, relu))
            cin = v
            idx += 2
    return layers


def init_params(layers, key):
    """Deterministic He-style init; weights reshaped to (9*Cin, Cout) bf16."""
    params = []
    for layer in layers:
        if layer[0] != 'conv':
            continue
        _, cin, cout, _ = layer
        key, wk, bk = jax.random.split(key, 3)
        std = (2.0 / (9.0 * cin)) ** 0.5
        w_torch = jax.random.normal(wk, (cout, cin, 3, 3), jnp.float32) * std
        # (Cout, Cin, 3, 3) -> (3, 3, Cin, Cout) -> (9*Cin, Cout); K index
        # ordering (tap-major, channel-minor) matches the patch layout.
        w = jnp.transpose(w_torch, (2, 3, 1, 0)).reshape(9 * cin, cout)
        w = w.astype(jnp.bfloat16)
        b = jax.random.normal(bk, (1, cout), jnp.float32) * 0.01
        params.append((w, b))
    return params


def feature_extractor_forward(x_nchw, params, layers):
    """Mirrors FeatureExtractor.forward: grayscale repeat + vgg19 features."""
    # PyTorch: if 4-D and channels == 1 -> repeat to 3 channels.
    if x_nchw.ndim == 4 and x_nchw.shape[1] == 1:
        x_nchw = jnp.tile(x_nchw, (1, 3, 1, 1))
    elif x_nchw.ndim == 3 and x_nchw.shape[0] == 1:
        x_nchw = jnp.tile(x_nchw, (3, 1, 1))[None]
    x = jnp.transpose(x_nchw, (0, 2, 3, 1)).astype(jnp.float32)   # NCHW -> NHWC

    pi = 0
    for layer in layers:
        if layer[0] == 'conv':
            _, _, _, relu = layer
            w, b = params[pi]
            pi += 1
            x = conv3x3_same(x, w, b, relu)
        else:
            x = maxpool2x2(x)
    return jnp.transpose(x, (0, 3, 1, 2))     # back to NCHW like PyTorch


# ----------------------------------------------------------------------------
# Demo
# ----------------------------------------------------------------------------

if __name__ == "__main__":
    key = jax.random.PRNGKey(0)
    key, xk = jax.random.split(key)

    # Grayscale 4-D input (exercises the 1 -> 3 channel repeat path).
    x = jax.random.normal(xk, (2, 1, 16, 16), jnp.float32)

    layers = build_vgg19_layers(conv_index=54)       # module default
    params = init_params(layers, key)

    feats = feature_extractor_forward(x, params, layers)
    feats = jax.block_until_ready(feats)

    # conv_index=54: 4 max-pools (16 -> 1 spatial), 512 output channels.
    assert feats.shape == (2, 512, 1, 1), feats.shape
    assert feats.dtype == jnp.float32

    print("KERNEL_OK")
</pallas_src>

<mosaic_0001>
module attributes {stable_mosaic.version = 11 : i64} {
  func.func @_conv_gemm_kernel(%arg0: i32, %arg1: i32, %arg2: memref<512x27xbf16, #tpu.memory_space<vmem>>, %arg3: memref<27x64xbf16, #tpu.memory_space<vmem>>, %arg4: memref<1x64xf32, #tpu.memory_space<vmem>>, %arg5: memref<512x64xf32, #tpu.memory_space<vmem>>) attributes {dimension_semantics = [#tpu.dimension_semantics<parallel>, #tpu.dimension_semantics<parallel>], iteration_bounds = array<i64: 1, 1>, scalar_prefetch = 0 : i64, scratch_operands = 0 : i64, tpu.core_type = #tpu.core_type<tc>, window_params = [{transform_indices = @transform_0, window_bounds = array<i64: 512, 27>}, {transform_indices = @transform_1, window_bounds = array<i64: 27, 64>}, {transform_indices = @transform_2, window_bounds = array<i64: 1, 64>}, {transform_indices = @transform_3, window_bounds = array<i64: 512, 64>}]} {
    %c0 = arith.constant 0 : index
    %c0_0 = arith.constant 0 : index
    %0 = vector.load %arg2[%c0, %c0_0] : memref<512x27xbf16, #tpu.memory_space<vmem>>, vector<512x27xbf16>
    %c0_1 = arith.constant 0 : index
    %c0_2 = arith.constant 0 : index
    %1 = vector.load %arg3[%c0_1, %c0_2] : memref<27x64xbf16, #tpu.memory_space<vmem>>, vector<27x64xbf16>
    %cst = arith.constant dense<0.000000e+00> : vector<512x64xf32>
    %2 = tpu.matmul %0, %1, %cst {dimension_numbers = #tpu.dot_dimension_numbers<[1], [0], [0], [1], [0, 0, 1, 1], [], []>} : vector<512x27xbf16>, vector<27x64xbf16>, vector<512x64xf32> -> vector<512x64xf32>
    %c0_3 = arith.constant 0 : index
    %c0_4 = arith.constant 0 : index
    %3 = vector.load %arg4[%c0_3, %c0_4] : memref<1x64xf32, #tpu.memory_space<vmem>>, vector<1x64xf32>
    %4 = vector.broadcast %3 : vector<1x64xf32> to vector<512x64xf32>
    %5 = arith.addf %2, %4 : vector<512x64xf32>
    %cst_5 = arith.constant 0.000000e+00 : f32
    %6 = vector.broadcast %cst_5 : f32 to vector<512x64xf32>
    %7 = arith.maximumf %5, %6 : vector<512x64xf32>
    %c0_6 = arith.constant 0 : index
    %c0_7 = arith.constant 0 : index
    %8 = vector.load %arg5[%c0_6, %c0_7] : memref<512x64xf32, #tpu.memory_space<vmem>>, vector<512x64xf32>
    tpu.vector_store %arg5[%c0_6, %c0_7], %7 {strides = array<i32>} : memref<512x64xf32, #tpu.memory_space<vmem>>, vector<512x64xf32>,
    return
  }
  func.func @transform_0(%arg0: i32, %arg1: i32) -> (i32, i32) {
    %c0_i32 = arith.constant 0 : i32
    %c0_i32_0 = arith.constant 0 : i32
    return %arg0, %c0_i32 : i32, i32
  }
  func.func @transform_1(%arg0: i32, %arg1: i32) -> (i32, i32) {
    %c0_i32 = arith.constant 0 : i32
    %c0_i32_0 = arith.constant 0 : i32
    return %c0_i32, %arg1 : i32, i32
  }
  func.func @transform_2(%arg0: i32, %arg1: i32) -> (i32, i32) {
    %c0_i32 = arith.constant 0 : i32
    %c0_i32_0 = arith.constant 0 : i32
    return %c0_i32, %arg1 : i32, i32
  }
  func.func @transform_3(%arg0: i32, %arg1: i32) -> (i32, i32) {
    %c0_i32 = arith.constant 0 : i32
    return %arg0, %arg1 : i32, i32
  }
}

</mosaic_0001>

<llo_original>
// kernel: tpu_custom_call.1
$region0: #{tpu_custom_call.1}
  #allocation0 [shape = 'u32[]', space=smem, size = 0x4, offset = 0x4, fixed_abs, tag = 'smem constant byte address 0x4 - core index']
  #allocation1 [shape = 'u32[144,128]{1,0:T(1,128)}', space=vmem, size = 0x12000, scoped, tag = 'internal scratch']
  %s0 = inlined_call_operand.vmem [shape: bf16[512,27], index: 0, kind: input, shape index: {}]
  %s1 = inlined_call_operand.vmem [shape: bf16[27,64], index: 1, kind: input, shape index: {}]
  %s2 = inlined_call_operand.vmem [shape: f32[1,64], index: 2, kind: input, shape index: {}]
  %s3 = inlined_call_operand.vmem [shape: f32[512,64], index: 3, kind: output, shape index: {}]
  %s4 = sld [smem:[#allocation0]]
  $region22: #{tpu_custom_call.1} parent=0
    _
  %s6 = ssub.s32 1, %s4
  %s7 = scalar_select 0, %s6, %s4
  // Predicated region
  $region2: #{tpu_custom_call.1} parent=0 // pred_check
    _
  $region3: #{tpu_custom_call.1} parent=0 // pred_check_branch
    %9 = sbr.rel (0) target = $region5
  $region4: #{tpu_custom_call.1} parent=0 // pred_region
    _
  $region5: #{tpu_custom_call.1} parent=0 // pred_fallthru
    _
  // Predicated region
  $region6: #{tpu_custom_call.1} parent=0 // pred_check
    _
  $region7: #{tpu_custom_call.1} parent=0 // pred_check_branch
    %11 = sbr.rel (0) target = $region9
  $region8: #{tpu_custom_call.1} parent=0 // pred_region
    _
  $region9: #{tpu_custom_call.1} parent=0 // pred_fallthru
    _
  // Predicated region
  $region10: #{tpu_custom_call.1} parent=0 // pred_check
    _
  $region11: #{tpu_custom_call.1} parent=0 // pred_check_branch
    %13 = sbr.rel (0) target = $region13
  $region12: #{tpu_custom_call.1} parent=0 // pred_region
    _
  $region13: #{tpu_custom_call.1} parent=0 // pred_fallthru
    _
  %v15 = vld [vmem:[%s0] sm:$0xf]
  %v16 = vld [vmem:[%s0 + $0x4] sm:$0xf]
  %v17 = vld [vmem:[%s0 + $0x8] sm:$0xf]
  %v18 = vld [vmem:[%s0 + $0xc] sm:$0xf]
  %v19 = vld [vmem:[%s0 + $0x10] sm:$0xf]
  %v20 = vld [vmem:[%s0 + $0x14] sm:$0xf]
  %v21 = vld [vmem:[%s0 + $0x18] sm:$0xf]
  %v22 = vld [vmem:[%s0 + $0x1c] sm:$0xf]
  %v23 = vld [vmem:[%s0 + $0x20] sm:$0xf]
  %v24 = vld [vmem:[%s0 + $0x24] sm:$0xf]
  %v25 = vld [vmem:[%s0 + $0x28] sm:$0xf]
  %v26 = vld [vmem:[%s0 + $0x2c] sm:$0xf]
  %v27 = vld [vmem:[%s0 + $0x30] sm:$0xf]
  %v28 = vld [vmem:[%s0 + $0x34] sm:$0xf]
  %v29 = vld [vmem:[%s0 + $0x38] sm:$0xf]
  %v30 = vld [vmem:[%s0 + $0x3c] sm:$0xf]
  %v31 = vld [vmem:[%s0 + $0x40] sm:$0xf]
  %v32 = vld [vmem:[%s0 + $0x44] sm:$0xf]
  %v33 = vld [vmem:[%s0 + $0x48] sm:$0xf]
  %v34 = vld [vmem:[%s0 + $0x4c] sm:$0xf]
  %v35 = vld [vmem:[%s0 + $0x50] sm:$0xf]
  %v36 = vld [vmem:[%s0 + $0x54] sm:$0xf]
  %v37 = vld [vmem:[%s0 + $0x58] sm:$0xf]
  %v38 = vld [vmem:[%s0 + $0x5c] sm:$0xf]
  %v39 = vld [vmem:[%s0 + $0x60] sm:$0xf]
  %v40 = vld [vmem:[%s0 + $0x64] sm:$0xf]
  %v41 = vld [vmem:[%s0 + $0x68] sm:$0xf]
  %v42 = vld [vmem:[%s0 + $0x6c] sm:$0xf]
  %v43 = vld [vmem:[%s0 + $0x70] sm:$0xf]
  %v44 = vld [vmem:[%s0 + $0x74] sm:$0xf]
  %v45 = vld [vmem:[%s0 + $0x78] sm:$0xf]
  %v46 = vld [vmem:[%s0 + $0x7c] sm:$0xf]
  %v47 = vld [vmem:[%s0 + $0x80] sm:$0xf]
  %v48 = vld [vmem:[%s0 + $0x84] sm:$0xf]
  %v49 = vld [vmem:[%s0 + $0x88] sm:$0xf]
  %v50 = vld [vmem:[%s0 + $0x8c] sm:$0xf]
  %v51 = vld [vmem:[%s0 + $0x90] sm:$0xf]
  %v52 = vld [vmem:[%s0 + $0x94] sm:$0xf]
  %v53 = vld [vmem:[%s0 + $0x98] sm:$0xf]
  %v54 = vld [vmem:[%s0 + $0x9c] sm:$0xf]
  %v55 = vld [vmem:[%s0 + $0xa0] sm:$0xf]
  %v56 = vld [vmem:[%s0 + $0xa4] sm:$0xf]
  %v57 = vld [vmem:[%s0 + $0xa8] sm:$0xf]
  %v58 = vld [vmem:[%s0 + $0xac] sm:$0xf]
  %v59 = vld [vmem:[%s0 + $0xb0] sm:$0xf]
  %v60 = vld [vmem:[%s0 + $0xb4] sm:$0xf]
  %v61 = vld [vmem:[%s0 + $0xb8] sm:$0xf]
  %v62 = vld [vmem:[%s0 + $0xbc] sm:$0xf]
  %v63 = vld [vmem:[%s0 + $0xc0] sm:$0xf]
  %v64 = vld [vmem:[%s0 + $0xc4] sm:$0xf]
  %v65 = vld [vmem:[%s0 + $0xc8] sm:$0xf]
  %v66 = vld [vmem:[%s0 + $0xcc] sm:$0xf]
  %v67 = vld [vmem:[%s0 + $0xd0] sm:$0xf]
  %v68 = vld [vmem:[%s0 + $0xd4] sm:$0xf]
  %v69 = vld [vmem:[%s0 + $0xd8] sm:$0xf]
  %v70 = vld [vmem:[%s0 + $0xdc] sm:$0xf]
  %v71 = vld [vmem:[%s0 + $0xe0] sm:$0xf]
  %v72 = vld [vmem:[%s0 + $0xe4] sm:$0xf]
  %v73 = vld [vmem:[%s0 + $0xe8] sm:$0xf]
  %v74 = vld [vmem:[%s0 + $0xec] sm:$0xf]
  %v75 = vld [vmem:[%s0 + $0xf0] sm:$0xf]
  %v76 = vld [vmem:[%s0 + $0xf4] sm:$0xf]
  %v77 = vld [vmem:[%s0 + $0xf8] sm:$0xf]
  %v78 = vld [vmem:[%s0 + $0xfc] sm:$0xf]
  %v79 = vld [vmem:[%s1] sm:$0xf]
  %v80 = vld [vmem:[%s1 + $0x4] sm:$0xf]
  %v81 = vld [vmem:[%s1 + $0x8] sm:$0xf]
  %v82 = vld [vmem:[%s1 + $0xc] sm:$0x3]
  %v83 = vld [vmem:[%s2] sm:$0x1]
  %v85 = vlaneseq
  %v86 = vshrl.u32 %v85, 7
  %v87 = vsub.s32 0, %v86
  %v88 = vrot.slane %v83, %v87
  %v154 = vunpack.c.l.b16 %v15
  %v155 = vunpack.c.l.b16 %v16
  %v156 = vunpack.c.l.b16 %v17
  %v157 = vunpack.c.l.b16 %v18
  %v158 = vunpack.c.l.b16 %v19
  %v159 = vunpack.c.l.b16 %v20
  %v160 = vunpack.c.l.b16 %v21
  %v161 = vunpack.c.l.b16 %v22
  %v162 = vunpack.c.l.b16 %v23
  %v163 = vunpack.c.l.b16 %v24
  %v164 = vunpack.c.l.b16 %v25
  %v165 = vunpack.c.l.b16 %v26
  %v166 = vunpack.c.l.b16 %v27
  %v167 = vunpack.c.l.b16 %v28
  %v168 = vunpack.c.l.b16 %v29
  %v169 = vunpack.c.l.b16 %v30
  %v170 = vunpack.c.l.b16 %v31
  %v171 = vunpack.c.l.b16 %v32
  %v172 = vunpack.c.l.b16 %v33
  %v173 = vunpack.c.l.b16 %v34
  %v174 = vunpack.c.l.b16 %v35
  %v175 = vunpack.c.l.b16 %v36
  %v176 = vunpack.c.l.b16 %v37
  %v177 = vunpack.c.l.b16 %v38
  %v178 = vunpack.c.l.b16 %v39
  %v179 = vunpack.c.l.b16 %v40
  %v180 = vunpack.c.l.b16 %v41
  %v181 = vunpack.c.l.b16 %v42
  %v182 = vunpack.c.l.b16 %v43
  %v183 = vunpack.c.l.b16 %v44
  %v184 = vunpack.c.l.b16 %v45
  %v185 = vunpack.c.l.b16 %v46
  %v186 = vunpack.c.l.b16 %v47
  %v187 = vunpack.c.l.b16 %v48
  %v188 = vunpack.c.l.b16 %v49
  %v189 = vunpack.c.l.b16 %v50
  %v190 = vunpack.c.l.b16 %v51
  %v191 = vunpack.c.l.b16 %v52
  %v192 = vunpack.c.l.b16 %v53
  %v193 = vunpack.c.l.b16 %v54
  %v194 = vunpack.c.l.b16 %v55
  %v195 = vunpack.c.l.b16 %v56
  %v196 = vunpack.c.l.b16 %v57
  %v197 = vunpack.c.l.b16 %v58
  %v198 = vunpack.c.l.b16 %v59
  %v199 = vunpack.c.l.b16 %v60
  %v200 = vunpack.c.l.b16 %v61
  %v201 = vunpack.c.l.b16 %v62
  %v202 = vunpack.c.l.b16 %v63
  %v203 = vunpack.c.l.b16 %v64
  %v204 = vunpack.c.l.b16 %v65
  %v205 = vunpack.c.l.b16 %v66
  %v206 = vunpack.c.l.b16 %v67
  %v207 = vunpack.c.l.b16 %v68
  %v208 = vunpack.c.l.b16 %v69
  %v209 = vunpack.c.l.b16 %v70
  %v210 = vunpack.c.l.b16 %v71
  %v211 = vunpack.c.l.b16 %v72
  %v212 = vunpack.c.l.b16 %v73
  %v213 = vunpack.c.l.b16 %v74
  %v214 = vunpack.c.l.b16 %v75
  %v215 = vunpack.c.l.b16 %v76
  %v216 = vunpack.c.l.b16 %v77
  %v217 = vunpack.c.l.b16 %v78
  %v218 = vpack.c.b16 %v155, %v154
  %v219 = vpack.c.b16 %v157, %v156
  %v220 = vpack.c.b16 %v159, %v158
  %v221 = vpack.c.b16 %v161, %v160
  %v222 = vpack.c.b16 %v163, %v162
  %v223 = vpack.c.b16 %v165, %v164
  %v224 = vpack.c.b16 %v167, %v166
  %v225 = vpack.c.b16 %v169, %v168
  %v226 = vpack.c.b16 %v171, %v170
  %v227 = vpack.c.b16 %v173, %v172
  %v228 = vpack.c.b16 %v175, %v174
  %v229 = vpack.c.b16 %v177, %v176
  %v230 = vpack.c.b16 %v179, %v178
  %v231 = vpack.c.b16 %v181, %v180
  %v232 = vpack.c.b16 %v183, %v182
  %v233 = vpack.c.b16 %v185, %v184
  %v234 = vpack.c.b16 %v187, %v186
  %v235 = vpack.c.b16 %v189, %v188
  %v236 = vpack.c.b16 %v191, %v190
  %v237 = vpack.c.b16 %v193, %v192
  %v238 = vpack.c.b16 %v195, %v194
  %v239 = vpack.c.b16 %v197, %v196
  %v240 = vpack.c.b16 %v199, %v198
  %v241 = vpack.c.b16 %v201, %v200
  %v242 = vpack.c.b16 %v203, %v202
  %v243 = vpack.c.b16 %v205, %v204
  %v244 = vpack.c.b16 %v207, %v206
  %v245 = vpack.c.b16 %v209, %v208
  %v246 = vpack.c.b16 %v211, %v210
  %v247 = vpack.c.b16 %v213, %v212
  %v248 = vpack.c.b16 %v215, %v214
  %v249 = vpack.c.b16 %v217, %v216
  %v254 = vunpack.c.l.b16 %v79
  %v255 = vunpack.c.l.b16 %v80
  %v256 = vunpack.c.l.b16 %v81
  %v257 = vunpack.c.l.b16 %v82
  %v258 = vpack.c.b16 %v255, %v254
  %v259 = vpack.c.b16 %v257, %v256
  %vm261 = vcmask 220160
  %v263 = vsel %vm261, %v218, 0
  %v266 = vsel %vm261, %v219, 0
  %v269 = vsel %vm261, %v220, 0
  %v272 = vsel %vm261, %v221, 0
  %v275 = vsel %vm261, %v222, 0
  %v278 = vsel %vm261, %v223, 0
  %v281 = vsel %vm261, %v224, 0
  %v284 = vsel %vm261, %v225, 0
  %v287 = vsel %vm261, %v226, 0
  %v290 = vsel %vm261, %v227, 0
  %v293 = vsel %vm261, %v228, 0
  %v296 = vsel %vm261, %v229, 0
  %v299 = vsel %vm261, %v230, 0
  %v302 = vsel %vm261, %v231, 0
  %v305 = vsel %vm261, %v232, 0
  %v308 = vsel %vm261, %v233, 0
  %v311 = vsel %vm261, %v234, 0
  %v314 = vsel %vm261, %v235, 0
  %v317 = vsel %vm261, %v236, 0
  %v320 = vsel %vm261, %v237, 0
  %v323 = vsel %vm261, %v238, 0
  %v326 = vsel %vm261, %v239, 0
  %v329 = vsel %vm261, %v240, 0
  %v332 = vsel %vm261, %v241, 0
  %v335 = vsel %vm261, %v242, 0
  %v338 = vsel %vm261, %v243, 0
  %v341 = vsel %vm261, %v244, 0
  %v344 = vsel %vm261, %v245, 0
  %v347 = vsel %vm261, %v246, 0
  %v350 = vsel %vm261, %v247, 0
  %v353 = vsel %vm261, %v248, 0
  %v356 = vsel %vm261, %v249, 0
  %vm358 = vcmask 1044480
  %vm359 = vcmask 1045504
  %v360 = vsel %vm358, 4294967295, 65535
  %v361 = vsel %vm359, %v360, 0
  %v363 = vand.u32 %v259, %v361
  %365 = vmatprep.subr.bf16.mxu0 0
  %366 = vmatpush1.bf16.msra.mxu0 0
  %367 = vmatprep.subr.bf16.mxu0 0
  %368 = vmatpush1.bf16.msra.mxu0 0
  %369 = vmatprep.subr.bf16.mxu0 0
  %370 = vmatpush1.bf16.msra.mxu0 0
  %371 = vmatprep.subr.bf16.mxu0 0
  %372 = vmatpush1.bf16.msra.mxu0 0
  %373 = vmatprep.subr.bf16.mxu0 0
  %374 = vmatpush1.bf16.msra.mxu0 0
  %375 = vmatprep.subr.bf16.mxu0 0
  %376 = vmatpush1.bf16.msra.mxu0 0
  %377 = vmatprep.subr.bf16.mxu0 0
  %378 = vmatpush1.bf16.msra.mxu0 %v363
  %379 = vmatprep.subr.bf16.mxu0 0
  %380 = vmatpush1.bf16.msra.mxu0 %v258
  %381 = vmatprep.subr.bf16.mxu0 0
  %382 = vmatpush2.bf16.msra.mxu0 0
  %383 = vmatprep.subr.bf16.mxu0 0
  %384 = vmatpush2.bf16.msra.mxu0 0
  %385 = vmatprep.subr.bf16.mxu0 0
  %386 = vmatpush2.bf16.msra.mxu0 0
  %387 = vmatprep.subr.bf16.mxu0 0
  %388 = vmatpush2.bf16.msra.mxu0 0
  %389 = vmatprep.subr.bf16.mxu0 0
  %390 = vmatpush2.bf16.msra.mxu0 0
  %391 = vmatprep.subr.bf16.mxu0 0
  %392 = vmatpush2.bf16.msra.mxu0 0
  %393 = vmatprep.subr.bf16.mxu0 0
  %394 = vmatpush2.bf16.msra.mxu0 0
  %395 = vmatprep.subr.bf16.mxu0 0
  %396 = vmatpush2.bf16.msra.mxu0 0
  %397 = vmatprep.mubr.bf16.mxu0 0
  %398 = vmatmul.mubr.bf16.gmra.mxu0 %v263
  %v399 = vpop.f32.mrf.mxu0
  %v400 = vadd.f32 %v88, %v399
  %v401 = vpop.f32.mrf.mxu0
  %v402 = vpop.f32.mrf.mxu0
  %v403 = vadd.f32 %v88, %v402
  %v404 = vpop.f32.mrf.mxu0
  %405 = vmatprep.mubr.bf16.mxu0 0
  %406 = vmatmul.mubr.bf16.gmra.mxu0 %v266
  %v407 = vpop.f32.mrf.mxu0
  %v408 = vadd.f32 %v88, %v407
  %v409 = vpop.f32.mrf.mxu0
  %v410 = vpop.f32.mrf.mxu0
  %v411 = vadd.f32 %v88, %v410
  %v412 = vpop.f32.mrf.mxu0
  %413 = vmatprep.mubr.bf16.mxu0 0
  %414 = vmatmul.mubr.bf16.gmra.mxu0 %v269
  %v415 = vpop.f32.mrf.mxu0
  %v416 = vadd.f32 %v88, %v415
  %v417 = vpop.f32.mrf.mxu0
  %v418 = vpop.f32.mrf.mxu0
  %v419 = vadd.f32 %v88, %v418
  %v420 = vpop.f32.mrf.mxu0
  %421 = vmatprep.mubr.bf16.mxu0 0
  %422 = vmatmul.mubr.bf16.gmra.mxu0 %v272
  %v423 = vpop.f32.mrf.mxu0
  %v424 = vadd.f32 %v88, %v423
  %v425 = vpop.f32.mrf.mxu0
  %v426 = vpop.f32.mrf.mxu0
  %v427 = vadd.f32 %v88, %v426
  %v428 = vpop.f32.mrf.mxu0
  %429 = vmatprep.mubr.bf16.mxu0 0
  %430 = vmatmul.mubr.bf16.gmra.mxu0 %v275
  %v431 = vpop.f32.mrf.mxu0
  %v432 = vadd.f32 %v88, %v431
  %v433 = vpop.f32.mrf.mxu0
  %v434 = vpop.f32.mrf.mxu0
  %v435 = vadd.f32 %v88, %v434
  %v436 = vpop.f32.mrf.mxu0
  %437 = vmatprep.mubr.bf16.mxu0 0
  %438 = vmatmul.mubr.bf16.gmra.mxu0 %v278
  %v439 = vpop.f32.mrf.mxu0
  %v440 = vadd.f32 %v88, %v439
  %v441 = vpop.f32.mrf.mxu0
  %v442 = vpop.f32.mrf.mxu0
  %v443 = vadd.f32 %v88, %v442
  %v444 = vpop.f32.mrf.mxu0
  %445 = vmatprep.mubr.bf16.mxu0 0
  %446 = vmatmul.mubr.bf16.gmra.mxu0 %v281
  %v447 = vpop.f32.mrf.mxu0
  %v448 = vadd.f32 %v88, %v447
  %v449 = vpop.f32.mrf.mxu0
  %v450 = vpop.f32.mrf.mxu0
  %v451 = vadd.f32 %v88, %v450
  %v452 = vpop.f32.mrf.mxu0
  %453 = vmatprep.mubr.bf16.mxu0 0
  %454 = vmatmul.mubr.bf16.gmra.mxu0 %v284
  %v455 = vpop.f32.mrf.mxu0
  %v456 = vadd.f32 %v88, %v455
  %v457 = vpop.f32.mrf.mxu0
  %v458 = vpop.f32.mrf.mxu0
  %v459 = vadd.f32 %v88, %v458
  %v460 = vpop.f32.mrf.mxu0
  %461 = vmatprep.mubr.bf16.mxu0 0
  %462 = vmatmul.mubr.bf16.gmra.mxu0 %v287
  %v463 = vpop.f32.mrf.mxu0
  %v464 = vadd.f32 %v88, %v463
  %v465 = vpop.f32.mrf.mxu0
  %v466 = vpop.f32.mrf.mxu0
  %v467 = vadd.f32 %v88, %v466
  %v468 = vpop.f32.mrf.mxu0
  %469 = vmatprep.mubr.bf16.mxu0 0
  %470 = vmatmul.mubr.bf16.gmra.mxu0 %v290
  %v471 = vpop.f32.mrf.mxu0
  %v472 = vadd.f32 %v88, %v471
  %v473 = vpop.f32.mrf.mxu0
  %v474 = vpop.f32.mrf.mxu0
  %v475 = vadd.f32 %v88, %v474
  %v476 = vpop.f32.mrf.mxu0
  %477 = vmatprep.mubr.bf16.mxu0 0
  %478 = vmatmul.mubr.bf16.gmra.mxu0 %v293
  %v479 = vpop.f32.mrf.mxu0
  %v480 = vadd.f32 %v88, %v479
  %v481 = vpop.f32.mrf.mxu0
  %v482 = vpop.f32.mrf.mxu0
  %v483 = vadd.f32 %v88, %v482
  %v484 = vpop.f32.mrf.mxu0
  %485 = vmatprep.mubr.bf16.mxu0 0
  %486 = vmatmul.mubr.bf16.gmra.mxu0 %v296
  %v487 = vpop.f32.mrf.mxu0
  %v488 = vadd.f32 %v88, %v487
  %v489 = vpop.f32.mrf.mxu0
  %v490 = vpop.f32.mrf.mxu0
  %v491 = vadd.f32 %v88, %v490
  %v492 = vpop.f32.mrf.mxu0
  %493 = vmatprep.mubr.bf16.mxu0 0
  %494 = vmatmul.mubr.bf16.gmra.mxu0 %v299
  %v495 = vpop.f32.mrf.mxu0
  %v496 = vadd.f32 %v88, %v495
  %v497 = vpop.f32.mrf.mxu0
  %v498 = vpop.f32.mrf.mxu0
  %v499 = vadd.f32 %v88, %v498
  %v500 = vpop.f32.mrf.mxu0
  %501 = vmatprep.mubr.bf16.mxu0 0
  %502 = vmatmul.mubr.bf16.gmra.mxu0 %v302
  %v503 = vpop.f32.mrf.mxu0
  %v504 = vadd.f32 %v88, %v503
  %v505 = vpop.f32.mrf.mxu0
  %v506 = vpop.f32.mrf.mxu0
  %v507 = vadd.f32 %v88, %v506
  %v508 = vpop.f32.mrf.mxu0
  %509 = vmatprep.mubr.bf16.mxu0 0
  %510 = vmatmul.mubr.bf16.gmra.mxu0 %v305
  %v511 = vpop.f32.mrf.mxu0
  %v512 = vadd.f32 %v88, %v511
  %v513 = vpop.f32.mrf.mxu0
  %v514 = vpop.f32.mrf.mxu0
  %v515 = vadd.f32 %v88, %v514
  %v516 = vpop.f32.mrf.mxu0
  %517 = vmatprep.mubr.bf16.mxu0 0
  %518 = vmatmul.mubr.bf16.gmra.mxu0 %v308
  %v519 = vpop.f32.mrf.mxu0
  %v520 = vadd.f32 %v88, %v519
  %v521 = vpop.f32.mrf.mxu0
  %v522 = vpop.f32.mrf.mxu0
  %v523 = vadd.f32 %v88, %v522
  %v524 = vpop.f32.mrf.mxu0
  %525 = vmatprep.mubr.bf16.mxu0 0
  %526 = vmatmul.mubr.bf16.gmra.mxu0 %v311
  %v527 = vpop.f32.mrf.mxu0
  %v528 = vadd.f32 %v88, %v527
  %v529 = vpop.f32.mrf.mxu0
  %v530 = vpop.f32.mrf.mxu0
  %v531 = vadd.f32 %v88, %v530
  %v532 = vpop.f32.mrf.mxu0
  %533 = vmatprep.mubr.bf16.mxu0 0
  %534 = vmatmul.mubr.bf16.gmra.mxu0 %v314
  %v535 = vpop.f32.mrf.mxu0
  %v536 = vadd.f32 %v88, %v535
  %v537 = vpop.f32.mrf.mxu0
  %v538 = vpop.f32.mrf.mxu0
  %v539 = vadd.f32 %v88, %v538
  %v540 = vpop.f32.mrf.mxu0
  %541 = vmatprep.mubr.bf16.mxu0 0
  %542 = vmatmul.mubr.bf16.gmra.mxu0 %v317
  %v543 = vpop.f32.mrf.mxu0
  %v544 = vadd.f32 %v88, %v543
  %v545 = vpop.f32.mrf.mxu0
  %v546 = vpop.f32.mrf.mxu0
  %v547 = vadd.f32 %v88, %v546
  %v548 = vpop.f32.mrf.mxu0
  %549 = vmatprep.mubr.bf16.mxu0 0
  %550 = vmatmul.mubr.bf16.gmra.mxu0 %v320
  %v551 = vpop.f32.mrf.mxu0
  %v552 = vadd.f32 %v88, %v551
  %v553 = vpop.f32.mrf.mxu0
  %v554 = vpop.f32.mrf.mxu0
  %v555 = vadd.f32 %v88, %v554
  %v556 = vpop.f32.mrf.mxu0
  %557 = vmatprep.mubr.bf16.mxu0 0
  %558 = vmatmul.mubr.bf16.gmra.mxu0 %v323
  %v559 = vpop.f32.mrf.mxu0
  %v560 = vadd.f32 %v88, %v559
  %v561 = vpop.f32.mrf.mxu0
  %v562 = vpop.f32.mrf.mxu0
  %v563 = vadd.f32 %v88, %v562
  %v564 = vpop.f32.mrf.mxu0
  %565 = vmatprep.mubr.bf16.mxu0 0
  %566 = vmatmul.mubr.bf16.gmra.mxu0 %v326
  %v567 = vpop.f32.mrf.mxu0
  %v568 = vadd.f32 %v88, %v567
  %v569 = vpop.f32.mrf.mxu0
  %v570 = vpop.f32.mrf.mxu0
  %v571 = vadd.f32 %v88, %v570
  %v572 = vpop.f32.mrf.mxu0
  %573 = vmatprep.mubr.bf16.mxu0 0
  %574 = vmatmul.mubr.bf16.gmra.mxu0 %v329
  %v575 = vpop.f32.mrf.mxu0
  %v576 = vadd.f32 %v88, %v575
  %v577 = vpop.f32.mrf.mxu0
  %v578 = vpop.f32.mrf.mxu0
  %v579 = vadd.f32 %v88, %v578
  %v580 = vpop.f32.mrf.mxu0
  %581 = vmatprep.mubr.bf16.mxu0 0
  %582 = vmatmul.mubr.bf16.gmra.mxu0 %v332
  %v583 = vpop.f32.mrf.mxu0
  %v584 = vadd.f32 %v88, %v583
  %v585 = vpop.f32.mrf.mxu0
  %v586 = vpop.f32.mrf.mxu0
  %v587 = vadd.f32 %v88, %v586
  %v588 = vpop.f32.mrf.mxu0
  %589 = vmatprep.mubr.bf16.mxu0 0
  %590 = vmatmul.mubr.bf16.gmra.mxu0 %v335
  %v591 = vpop.f32.mrf.mxu0
  %v592 = vadd.f32 %v88, %v591
  %v593 = vpop.f32.mrf.mxu0
  %v594 = vpop.f32.mrf.mxu0
  %v595 = vadd.f32 %v88, %v594
  %v596 = vpop.f32.mrf.mxu0
  %597 = vmatprep.mubr.bf16.mxu0 0
  %598 = vmatmul.mubr.bf16.gmra.mxu0 %v338
  %v599 = vpop.f32.mrf.mxu0
  %v600 = vadd.f32 %v88, %v599
  %v601 = vpop.f32.mrf.mxu0
  %v602 = vpop.f32.mrf.mxu0
  %v603 = vadd.f32 %v88, %v602
  %v604 = vpop.f32.mrf.mxu0
  %605 = vmatprep.mubr.bf16.mxu0 0
  %606 = vmatmul.mubr.bf16.gmra.mxu0 %v341
  %v607 = vpop.f32.mrf.mxu0
  %v608 = vadd.f32 %v88, %v607
  %v609 = vpop.f32.mrf.mxu0
  %v610 = vpop.f32.mrf.mxu0
  %v611 = vadd.f32 %v88, %v610
  %v612 = vpop.f32.mrf.mxu0
  %613 = vmatprep.mubr.bf16.mxu0 0
  %614 = vmatmul.mubr.bf16.gmra.mxu0 %v344
  %v615 = vpop.f32.mrf.mxu0
  %v616 = vadd.f32 %v88, %v615
  %v617 = vpop.f32.mrf.mxu0
  %v618 = vpop.f32.mrf.mxu0
  %v619 = vadd.f32 %v88, %v618
  %v620 = vpop.f32.mrf.mxu0
  %621 = vmatprep.mubr.bf16.mxu0 0
  %622 = vmatmul.mubr.bf16.gmra.mxu0 %v347
  %v623 = vpop.f32.mrf.mxu0
  %v624 = vadd.f32 %v88, %v623
  %v625 = vpop.f32.mrf.mxu0
  %v626 = vpop.f32.mrf.mxu0
  %v627 = vadd.f32 %v88, %v626
  %v628 = vpop.f32.mrf.mxu0
  %629 = vmatprep.mubr.bf16.mxu0 0
  %630 = vmatmul.mubr.bf16.gmra.mxu0 %v350
  %v631 = vpop.f32.mrf.mxu0
  %v632 = vadd.f32 %v88, %v631
  %v633 = vpop.f32.mrf.mxu0
  %v634 = vpop.f32.mrf.mxu0
  %v635 = vadd.f32 %v88, %v634
  %v636 = vpop.f32.mrf.mxu0
  %637 = vmatprep.mubr.bf16.mxu0 0
  %638 = vmatmul.mubr.bf16.gmra.mxu0 %v353
  %v639 = vpop.f32.mrf.mxu0
  %v640 = vadd.f32 %v88, %v639
  %v641 = vpop.f32.mrf.mxu0
  %v642 = vpop.f32.mrf.mxu0
  %v643 = vadd.f32 %v88, %v642
  %v644 = vpop.f32.mrf.mxu0
  %645 = vmatprep.mubr.bf16.mxu0 0
  %646 = vmatmul.mubr.bf16.gmra.mxu0 %v356
  %v647 = vpop.f32.mrf.mxu0
  %v648 = vadd.f32 %v88, %v647
  %v649 = vpop.f32.mrf.mxu0
  %v650 = vpop.f32.mrf.mxu0
  %v651 = vadd.f32 %v88, %v650
  %v652 = vpop.f32.mrf.mxu0
  %653 = vdwg.mxu0
  %v654 = vmax.f32 %v400, 0.0
  %v655 = vmax.f32 %v403, 0.0
  %v656 = vmax.f32 %v408, 0.0
  %v657 = vmax.f32 %v411, 0.0
  %v658 = vmax.f32 %v416, 0.0
  %v659 = vmax.f32 %v419, 0.0
  %v660 = vmax.f32 %v424, 0.0
  %v661 = vmax.f32 %v427, 0.0
  %v662 = vmax.f32 %v432, 0.0
  %v663 = vmax.f32 %v435, 0.0
  %v664 = vmax.f32 %v440, 0.0
  %v665 = vmax.f32 %v443, 0.0
  %v666 = vmax.f32 %v448, 0.0
  %v667 = vmax.f32 %v451, 0.0
  %v668 = vmax.f32 %v456, 0.0
  %v669 = vmax.f32 %v459, 0.0
  %v670 = vmax.f32 %v464, 0.0
  %v671 = vmax.f32 %v467, 0.0
  %v672 = vmax.f32 %v472, 0.0
  %v673 = vmax.f32 %v475, 0.0
  %v674 = vmax.f32 %v480, 0.0
  %v675 = vmax.f32 %v483, 0.0
  %v676 = vmax.f32 %v488, 0.0
  %v677 = vmax.f32 %v491, 0.0
  %v678 = vmax.f32 %v496, 0.0
  %v679 = vmax.f32 %v499, 0.0
  %v680 = vmax.f32 %v504, 0.0
  %v681 = vmax.f32 %v507, 0.0
  %v682 = vmax.f32 %v512, 0.0
  %v683 = vmax.f32 %v515, 0.0
  %v684 = vmax.f32 %v520, 0.0
  %v685 = vmax.f32 %v523, 0.0
  %v686 = vmax.f32 %v528, 0.0
  %v687 = vmax.f32 %v531, 0.0
  %v688 = vmax.f32 %v536, 0.0
  %v689 = vmax.f32 %v539, 0.0
  %v690 = vmax.f32 %v544, 0.0
  %v691 = vmax.f32 %v547, 0.0
  %v692 = vmax.f32 %v552, 0.0
  %v693 = vmax.f32 %v555, 0.0
  %v694 = vmax.f32 %v560, 0.0
  %v695 = vmax.f32 %v563, 0.0
  %v696 = vmax.f32 %v568, 0.0
  %v697 = vmax.f32 %v571, 0.0
  %v698 = vmax.f32 %v576, 0.0
  %v699 = vmax.f32 %v579, 0.0
  %v700 = vmax.f32 %v584, 0.0
  %v701 = vmax.f32 %v587, 0.0
  %v702 = vmax.f32 %v592, 0.0
  %v703 = vmax.f32 %v595, 0.0
  %v704 = vmax.f32 %v600, 0.0
  %v705 = vmax.f32 %v603, 0.0
  %v706 = vmax.f32 %v608, 0.0
  %v707 = vmax.f32 %v611, 0.0
  %v708 = vmax.f32 %v616, 0.0
  %v709 = vmax.f32 %v619, 0.0
  %v710 = vmax.f32 %v624, 0.0
  %v711 = vmax.f32 %v627, 0.0
  %v712 = vmax.f32 %v632, 0.0
  %v713 = vmax.f32 %v635, 0.0
  %v714 = vmax.f32 %v640, 0.0
  %v715 = vmax.f32 %v643, 0.0
  %v716 = vmax.f32 %v648, 0.0
  %v717 = vmax.f32 %v651, 0.0
  %vm718 = vcmask 523264
  %719 = vst.msk [vmem:[%s3] sm:$0xff] %vm718, %v654
  %720 = vst.msk [vmem:[%s3 + $0x8] sm:$0xff] %vm718, %v655
  %721 = vst.msk [vmem:[%s3 + $0x10] sm:$0xff] %vm718, %v656
  %722 = vst.msk [vmem:[%s3 + $0x18] sm:$0xff] %vm718, %v657
  %723 = vst.msk [vmem:[%s3 + $0x20] sm:$0xff] %vm718, %v658
  %724 = vst.msk [vmem:[%s3 + $0x28] sm:$0xff] %vm718, %v659
  %725 = vst.msk [vmem:[%s3 + $0x30] sm:$0xff] %vm718, %v660
  %726 = vst.msk [vmem:[%s3 + $0x38] sm:$0xff] %vm718, %v661
  %727 = vst.msk [vmem:[%s3 + $0x40] sm:$0xff] %vm718, %v662
  %728 = vst.msk [vmem:[%s3 + $0x48] sm:$0xff] %vm718, %v663
  %729 = vst.msk [vmem:[%s3 + $0x50] sm:$0xff] %vm718, %v664
  %730 = vst.msk [vmem:[%s3 + $0x58] sm:$0xff] %vm718, %v665
  %731 = vst.msk [vmem:[%s3 + $0x60] sm:$0xff] %vm718, %v666
  %732 = vst.msk [vmem:[%s3 + $0x68] sm:$0xff] %vm718, %v667
  %733 = vst.msk [vmem:[%s3 + $0x70] sm:$0xff] %vm718, %v668
  %734 = vst.msk [vmem:[%s3 + $0x78] sm:$0xff] %vm718, %v669
  %735 = vst.msk [vmem:[%s3 + $0x80] sm:$0xff] %vm718, %v670
  %736 = vst.msk [vmem:[%s3 + $0x88] sm:$0xff] %vm718, %v671
  %737 = vst.msk [vmem:[%s3 + $0x90] sm:$0xff] %vm718, %v672
  %738 = vst.msk [vmem:[%s3 + $0x98] sm:$0xff] %vm718, %v673
  %739 = vst.msk [vmem:[%s3 + $0xa0] sm:$0xff] %vm718, %v674
  %740 = vst.msk [vmem:[%s3 + $0xa8] sm:$0xff] %vm718, %v675
  %741 = vst.msk [vmem:[%s3 + $0xb0] sm:$0xff] %vm718, %v676
  %742 = vst.msk [vmem:[%s3 + $0xb8] sm:$0xff] %vm718, %v677
  %743 = vst.msk [vmem:[%s3 + $0xc0] sm:$0xff] %vm718, %v678
  %744 = vst.msk [vmem:[%s3 + $0xc8] sm:$0xff] %vm718, %v679
  %745 = vst.msk [vmem:[%s3 + $0xd0] sm:$0xff] %vm718, %v680
  %746 = vst.msk [vmem:[%s3 + $0xd8] sm:$0xff] %vm718, %v681
  %747 = vst.msk [vmem:[%s3 + $0xe0] sm:$0xff] %vm718, %v682
  %748 = vst.msk [vmem:[%s3 + $0xe8] sm:$0xff] %vm718, %v683
  %749 = vst.msk [vmem:[%s3 + $0xf0] sm:$0xff] %vm718, %v684
  %750 = vst.msk [vmem:[%s3 + $0xf8] sm:$0xff] %vm718, %v685
  %751 = vst.msk [vmem:[%s3 + $0x100] sm:$0xff] %vm718, %v686
  %752 = vst.msk [vmem:[%s3 + $0x108] sm:$0xff] %vm718, %v687
  %753 = vst.msk [vmem:[%s3 + $0x110] sm:$0xff] %vm718, %v688
  %754 = vst.msk [vmem:[%s3 + $0x118] sm:$0xff] %vm718, %v689
  %755 = vst.msk [vmem:[%s3 + $0x120] sm:$0xff] %vm718, %v690
  %756 = vst.msk [vmem:[%s3 + $0x128] sm:$0xff] %vm718, %v691
  %757 = vst.msk [vmem:[%s3 + $0x130] sm:$0xff] %vm718, %v692
  %758 = vst.msk [vmem:[%s3 + $0x138] sm:$0xff] %vm718, %v693
  %759 = vst.msk [vmem:[%s3 + $0x140] sm:$0xff] %vm718, %v694
  %760 = vst.msk [vmem:[%s3 + $0x148] sm:$0xff] %vm718, %v695
  %761 = vst.msk [vmem:[%s3 + $0x150] sm:$0xff] %vm718, %v696
  %762 = vst.msk [vmem:[%s3 + $0x158] sm:$0xff] %vm718, %v697
  %763 = vst.msk [vmem:[%s3 + $0x160] sm:$0xff] %vm718, %v698
  %764 = vst.msk [vmem:[%s3 + $0x168] sm:$0xff] %vm718, %v699
  %765 = vst.msk [vmem:[%s3 + $0x170] sm:$0xff] %vm718, %v700
  %766 = vst.msk [vmem:[%s3 + $0x178] sm:$0xff] %vm718, %v701
  %767 = vst.msk [vmem:[%s3 + $0x180] sm:$0xff] %vm718, %v702
  %768 = vst.msk [vmem:[%s3 + $0x188] sm:$0xff] %vm718, %v703
  %769 = vst.msk [vmem:[%s3 + $0x190] sm:$0xff] %vm718, %v704
  %770 = vst.msk [vmem:[%s3 + $0x198] sm:$0xff] %vm718, %v705
  %771 = vst.msk [vmem:[%s3 + $0x1a0] sm:$0xff] %vm718, %v706
  %772 = vst.msk [vmem:[%s3 + $0x1a8] sm:$0xff] %vm718, %v707
  %773 = vst.msk [vmem:[%s3 + $0x1b0] sm:$0xff] %vm718, %v708
  %774 = vst.msk [vmem:[%s3 + $0x1b8] sm:$0xff] %vm718, %v709
  %775 = vst.msk [vmem:[%s3 + $0x1c0] sm:$0xff] %vm718, %v710
  %776 = vst.msk [vmem:[%s3 + $0x1c8] sm:$0xff] %vm718, %v711
  %777 = vst.msk [vmem:[%s3 + $0x1d0] sm:$0xff] %vm718, %v712
  %778 = vst.msk [vmem:[%s3 + $0x1d8] sm:$0xff] %vm718, %v713
  %779 = vst.msk [vmem:[%s3 + $0x1e0] sm:$0xff] %vm718, %v714
  %780 = vst.msk [vmem:[%s3 + $0x1e8] sm:$0xff] %vm718, %v715
  %781 = vst.msk [vmem:[%s3 + $0x1f0] sm:$0xff] %vm718, %v716
  %782 = vst.msk [vmem:[%s3 + $0x1f8] sm:$0xff] %vm718, %v717
  // Predicated region
  $region14: #{tpu_custom_call.1} parent=0 // pred_check
    _
  $region15: #{tpu_custom_call.1} parent=0 // pred_check_branch
    %784 = sbr.rel (0) target = $region17
  $region16: #{tpu_custom_call.1} parent=0 // pred_region
    _
  $region17: #{tpu_custom_call.1} parent=0 // pred_fallthru
    _
  // Predicated region
  $region18: #{tpu_custom_call.1} parent=0 // pred_check
    _
  $region19: #{tpu_custom_call.1} parent=0 // pred_check_branch
    %786 = sbr.rel (0) target = $region21
  $region20: #{tpu_custom_call.1} parent=0 // pred_region
    _
  $region21: #{tpu_custom_call.1} parent=0 // pred_fallthru
    _

</llo_original>
